<compile_context>
chip_gen: v7x
topology: tpu7x:2x2x1
jax: 0.10.0
libtpu: 0.0.40
codegen_flags: <defaults>
</compile_context>

<pallas_src>
import functools

import jax
import jax.numpy as jnp
from jax.experimental import pallas as pl
from jax.experimental.pallas import tpu as pltpu

EPS = 1e-5  # torch.nn.functional.layer_norm default


def _round_up(x, m):
    return (x + m - 1) // m * m


def _pick_row_tile(R, target, gran):
    """Pick a row tile that is a multiple of `gran` sublanes, prefers dividing R
    exactly (avoids a wrapper-side pad copy of the entire input), and keeps the
    grid at >= 2 steps when R allows (v7x has 2 TensorCores)."""
    target = _round_up(max(gran, min(int(target), _round_up(R, gran))), gran)
    if R >= 2 * gran:
        # cap so the grid has at least two steps
        half = _round_up((R + 1) // 2, gran)
        target = min(target, max(gran, half))
    cand = target
    while cand >= max(gran, target // 2):
        if R % cand == 0:
            return cand
        cand -= gran
    return target  # no clean divisor in [target/2, target]; fall back to padding


def patch_embed_kernel(x_ref, w_ref, c_ref, kmask_ref, o_ref, *,
                       patch_dim, out_dim, k_padded, dim_padded):
    # x_ref     : (TR, K_p)       streamed row tile (input dtype), K-pad cols = 0
    # w_ref     : (K_p, D_p) bf16 folded weight W' (resident, single-buffered)
    # c_ref     : (4, D_p)  f32   rows: [b', gamma2, beta2, dim-mask]
    # kmask_ref : (1, K_p)  f32   1.0 on true patch_dim columns, 0.0 on K-pads
    x = x_ref[...].astype(jnp.float32)

    # --- LayerNorm #1: pure normalize (affine folded into W'/b') ---
    inv_k = 1.0 / patch_dim
    mu = jnp.sum(x, axis=-1, keepdims=True) * inv_k   # pad cols of x are 0
    xc = x - mu
    if k_padded:
        xc = xc * kmask_ref[...]                      # zero K-pad columns
    var = jnp.sum(xc * xc, axis=-1, keepdims=True) * inv_k
    xn = xc * jax.lax.rsqrt(var + EPS)

    # --- projection: bf16 operands, f32 accumulation on the MXU ---
    y = jnp.dot(xn.astype(w_ref.dtype), w_ref[...],
                preferred_element_type=jnp.float32)
    y = y + c_ref[0:1, :]                             # b' (pad cols = 0)

    # --- LayerNorm #2 over the true `out_dim` columns ---
    # Pad columns of y are exactly zero (weight/bias pads are zero), so the
    # plain sum / out_dim mean is correct; the variance masks pad columns with
    # a precomputed f32 mask row (no iota / compare / select per step).
    inv_n = 1.0 / out_dim
    mu2 = jnp.sum(y, axis=-1, keepdims=True) * inv_n
    yc = y - mu2
    sq = yc * yc
    if dim_padded:
        sq = sq * c_ref[3:4, :]
    var2 = jnp.sum(sq, axis=-1, keepdims=True) * inv_n
    yn = yc * jax.lax.rsqrt(var2 + EPS)

    # gamma2 / beta2 pad columns are zero -> output pad columns are zero.
    o_ref[...] = (yn * c_ref[1:2, :] + c_ref[2:3, :]).astype(o_ref.dtype)


@functools.partial(jax.jit, static_argnames=("row_tile", "bf16_matmul"))
def patch_embedding(patches, gamma1, beta1, weight, bias, gamma2, beta2,
                    row_tile=512, bf16_matmul=True):
    """patches: (B, N, patch_dim) -> (B, N, dim)."""
    B, N, patch_dim = patches.shape
    dim = weight.shape[1]
    R = B * N
    in_bytes = jnp.dtype(patches.dtype).itemsize
    w_bytes = 2 if bf16_matmul else 4

    # ---- fold the pre-norm affine into the projection (one-time, exact f32) ----
    w32 = weight.astype(jnp.float32)
    w_eff = w32 * gamma1.astype(jnp.float32)[:, None]
    b_eff = bias.astype(jnp.float32) + beta1.astype(jnp.float32) @ w32

    # ---- pad feature dims to lane-dense multiples of 128 ----
    dim_p = _round_up(dim, 128)
    K_p = _round_up(patch_dim, 128)
    pad_d = dim_p - dim
    pad_k = K_p - patch_dim
    g2 = gamma2.astype(jnp.float32)
    b2 = beta2.astype(jnp.float32)
    if pad_d or pad_k:
        w_eff = jnp.pad(w_eff, ((0, pad_k), (0, pad_d)))
    if pad_d:
        b_eff = jnp.pad(b_eff, (0, pad_d))
        g2 = jnp.pad(g2, (0, pad_d))
        b2 = jnp.pad(b2, (0, pad_d))

    w_k = w_eff.astype(jnp.bfloat16) if bf16_matmul else w_eff
    dmask = (jnp.arange(dim_p) < dim).astype(jnp.float32)
    consts = jnp.stack([b_eff, g2, b2, dmask], axis=0)          # (4, dim_p)
    kmask = (jnp.arange(K_p) < patch_dim).astype(jnp.float32).reshape(1, K_p)

    # ---- row tiling: prefer a tile that divides R, keep grid >= 2 steps ----
    gran = {4: 8, 2: 16, 1: 32}.get(in_bytes, 8)
    tile = _pick_row_tile(R, row_tile, gran)
    R_p = _round_up(R, tile)

    x2d = patches.reshape(R, patch_dim)
    if R_p != R or pad_k:
        # single pad op (one copy) covering both ragged rows and K padding
        x2d = jnp.pad(x2d, ((0, R_p - R), (0, pad_k)))

    grid = (R_p // tile,)

    # ---- explicit VMEM budget: 2x streamed x + 2x streamed out + 1x weight
    #      + packed consts + f32 temporaries, floored at the 32 MiB default and
    #      capped at the v7x 64 MiB per-core physical VMEM. ----
    io_bytes = (2 * tile * K_p * in_bytes          # x, double-buffered
                + 2 * tile * dim_p * in_bytes      # out, double-buffered
                + 1 * K_p * dim_p * w_bytes        # W', single-buffered
                + 8 * dim_p * 4 + 8 * K_p * 4)     # consts (sublane-padded)
    interm_bytes = tile * (K_p + 2 * dim_p) * 4    # f32 temporaries estimate
    vmem_limit = int(min(max(io_bytes + interm_bytes + (8 << 20), 32 << 20),
                         64 << 20))

    cost = pl.CostEstimate(
        flops=2 * R * patch_dim * dim + 10 * R * (patch_dim + dim),
        transcendentals=2 * R,  # two rsqrt per row
        bytes_accessed=(R * patch_dim * in_bytes + R * dim * in_bytes
                        + K_p * dim_p * w_bytes),
    )

    kernel = functools.partial(patch_embed_kernel,
                               patch_dim=patch_dim, out_dim=dim,
                               k_padded=bool(pad_k), dim_padded=bool(pad_d))

    resident = pl.Buffered(1)  # constant index_map -> no second buffer
    out2d = pl.pallas_call(
        kernel,
        out_shape=jax.ShapeDtypeStruct((R_p, dim_p), patches.dtype),
        grid_spec=pltpu.PrefetchScalarGridSpec(
            num_scalar_prefetch=0,
            grid=grid,
            in_specs=[
                pl.BlockSpec((tile, K_p), lambda i: (i, 0)),        # x rows
                pl.BlockSpec((K_p, dim_p), lambda i: (0, 0),
                             pipeline_mode=resident),               # W'
                pl.BlockSpec((4, dim_p), lambda i: (0, 0),
                             pipeline_mode=resident),               # packed consts
                pl.BlockSpec((1, K_p), lambda i: (0, 0),
                             pipeline_mode=resident),               # K mask
            ],
            out_specs=pl.BlockSpec((tile, dim_p), lambda i: (i, 0)),
        ),
        compiler_params=pltpu.CompilerParams(
            dimension_semantics=("parallel",),
            vmem_limit_bytes=vmem_limit),
        cost_estimate=cost,
    )(x2d, w_k, consts, kmask)

    # Slice away row padding and lane padding (no-op when nothing was padded).
    return out2d[:R, :dim].reshape(B, N, dim)


def reference(patches, gamma1, beta1, weight, bias, gamma2, beta2):
    """Pure-JAX f32 reference matching the PyTorch module."""
    x = patches.astype(jnp.float32)
    mu = x.mean(-1, keepdims=True)
    var = ((x - mu) ** 2).mean(-1, keepdims=True)
    x = (x - mu) * jax.lax.rsqrt(var + EPS) * gamma1 + beta1
    x = x @ weight.astype(jnp.float32) + bias
    mu = x.mean(-1, keepdims=True)
    var = ((x - mu) ** 2).mean(-1, keepdims=True)
    x = (x - mu) * jax.lax.rsqrt(var + EPS) * gamma2 + beta2
    return x.astype(patches.dtype)


if __name__ == "__main__":
    # small shapes: batch=2, num_patches=8, patch_dim=32, dim=64
    # (exercises the divisor row-tile pick, K->128 padding + mask, dim->128
    #  lane padding + mask, and the Buffered(1) resident constants)
    B, N, patch_dim, dim = 2, 8, 32, 64

    key = jax.random.PRNGKey(0)
    k_x, k_w, k_b, k_g1, k_b1, k_g2, k_b2 = jax.random.split(key, 7)

    patches = jax.random.normal(k_x, (B, N, patch_dim), dtype=jnp.float32)

    # LayerNorm params: perturb away from (1, 0) init to exercise the affine fold.
    gamma1 = 1.0 + 0.1 * jax.random.normal(k_g1, (patch_dim,), jnp.float32)
    beta1 = 0.1 * jax.random.normal(k_b1, (patch_dim,), jnp.float32)
    gamma2 = 1.0 + 0.1 * jax.random.normal(k_g2, (dim,), jnp.float32)
    beta2 = 0.1 * jax.random.normal(k_b2, (dim,), jnp.float32)

    # Linear params; PyTorch stores W as (dim, patch_dim) and does x @ W.T;
    # here W is materialized directly as (patch_dim, dim). U(-1/sqrt(fan_in), ..)
    bound = 1.0 / (patch_dim ** 0.5)
    weight = jax.random.uniform(k_w, (patch_dim, dim), jnp.float32,
                                minval=-bound, maxval=bound)
    bias = jax.random.uniform(k_b, (dim,), jnp.float32,
                              minval=-bound, maxval=bound)

    out = patch_embedding(patches, gamma1, beta1, weight, bias, gamma2, beta2)
    out = jax.block_until_ready(out)

    ref = reference(patches, gamma1, beta1, weight, bias, gamma2, beta2)
    assert out.shape == (B, N, dim)
    # Tolerance loosened vs a pure-f32 check because the projection runs with
    # bf16 operands (f32 accumulation) for native MXU throughput.
    assert jnp.allclose(out, ref, atol=3e-2, rtol=3e-2), "mismatch vs reference"

    print("KERNEL_OK")
</pallas_src>

<mosaic_0001>
module attributes {stable_mosaic.version = 11 : i64} {
  func.func @patch_embed_kernel(%arg0: i32, %arg1: memref<8x128xf32, #tpu.memory_space<vmem>>, %arg2: memref<128x128xbf16, #tpu.memory_space<vmem>>, %arg3: memref<4x128xf32, #tpu.memory_space<vmem>>, %arg4: memref<1x128xf32, #tpu.memory_space<vmem>>, %arg5: memref<8x128xf32, #tpu.memory_space<vmem>>) attributes {dimension_semantics = [#tpu.dimension_semantics<parallel>], iteration_bounds = array<i64: 2>, scalar_prefetch = 0 : i64, scratch_operands = 0 : i64, tpu.core_type = #tpu.core_type<tc>, window_params = [{transform_indices = @transform_0, window_bounds = array<i64: 8, 128>}, {pipeline_mode = #tpu.pipeline_mode<synchronous>, transform_indices = @transform_1, window_bounds = array<i64: 128, 128>}, {pipeline_mode = #tpu.pipeline_mode<synchronous>, transform_indices = @transform_2, window_bounds = array<i64: 4, 128>}, {pipeline_mode = #tpu.pipeline_mode<synchronous>, transform_indices = @transform_3, window_bounds = array<i64: 1, 128>}, {transform_indices = @transform_4, window_bounds = array<i64: 8, 128>}]} {
    %c0 = arith.constant 0 : index
    %c0_0 = arith.constant 0 : index
    %0 = vector.load %arg1[%c0, %c0_0] : memref<8x128xf32, #tpu.memory_space<vmem>>, vector<8x128xf32>
    %cst = arith.constant dense<0.000000e+00> : vector<8xf32>
    %1 = vector.multi_reduction <add>, %0, %cst [1] : vector<8x128xf32> to vector<8xf32>
    %2 = vector.shape_cast %1 : vector<8xf32> to vector<8x1xf32>
    %cst_1 = arith.constant 3.125000e-02 : f32
    %3 = vector.broadcast %cst_1 : f32 to vector<8x1xf32>
    %4 = arith.mulf %2, %3 : vector<8x1xf32>
    %5 = vector.broadcast %4 : vector<8x1xf32> to vector<8x128xf32>
    %6 = arith.subf %0, %5 : vector<8x128xf32>
    %c0_2 = arith.constant 0 : index
    %c0_3 = arith.constant 0 : index
    %7 = vector.load %arg4[%c0_2, %c0_3] : memref<1x128xf32, #tpu.memory_space<vmem>>, vector<1x128xf32>
    %8 = vector.broadcast %7 : vector<1x128xf32> to vector<8x128xf32>
    %9 = arith.mulf %6, %8 : vector<8x128xf32>
    %10 = arith.mulf %9, %9 : vector<8x128xf32>
    %cst_4 = arith.constant dense<0.000000e+00> : vector<8xf32>
    %11 = vector.multi_reduction <add>, %10, %cst_4 [1] : vector<8x128xf32> to vector<8xf32>
    %12 = vector.shape_cast %11 : vector<8xf32> to vector<8x1xf32>
    %cst_5 = arith.constant 3.125000e-02 : f32
    %13 = vector.broadcast %cst_5 : f32 to vector<8x1xf32>
    %14 = arith.mulf %12, %13 : vector<8x1xf32>
    %cst_6 = arith.constant 9.99999974E-6 : f32
    %15 = vector.broadcast %cst_6 : f32 to vector<8x1xf32>
    %16 = arith.addf %14, %15 : vector<8x1xf32>
    %17 = math.rsqrt %16 : vector<8x1xf32>
    %18 = vector.broadcast %17 : vector<8x1xf32> to vector<8x128xf32>
    %19 = arith.mulf %9, %18 : vector<8x128xf32>
    %20 = arith.truncf %19 : vector<8x128xf32> to vector<8x128xbf16>
    %c0_7 = arith.constant 0 : index
    %c0_8 = arith.constant 0 : index
    %21 = vector.load %arg2[%c0_7, %c0_8] : memref<128x128xbf16, #tpu.memory_space<vmem>>, vector<128x128xbf16>
    %cst_9 = arith.constant dense<0.000000e+00> : vector<8x128xf32>
    %22 = tpu.matmul %20, %21, %cst_9 {dimension_numbers = #tpu.dot_dimension_numbers<[1], [0], [0], [1], [0, 0, 1, 1], [], []>} : vector<8x128xbf16>, vector<128x128xbf16>, vector<8x128xf32> -> vector<8x128xf32>
    %c0_10 = arith.constant 0 : index
    %c0_11 = arith.constant 0 : index
    %23 = vector.load %arg3[%c0_10, %c0_11] : memref<4x128xf32, #tpu.memory_space<vmem>>, vector<1x128xf32>
    %24 = vector.broadcast %23 : vector<1x128xf32> to vector<8x128xf32>
    %25 = arith.addf %22, %24 : vector<8x128xf32>
    %cst_12 = arith.constant dense<0.000000e+00> : vector<8xf32>
    %26 = vector.multi_reduction <add>, %25, %cst_12 [1] : vector<8x128xf32> to vector<8xf32>
    %27 = vector.shape_cast %26 : vector<8xf32> to vector<8x1xf32>
    %cst_13 = arith.constant 1.562500e-02 : f32
    %28 = vector.broadcast %cst_13 : f32 to vector<8x1xf32>
    %29 = arith.mulf %27, %28 : vector<8x1xf32>
    %30 = vector.broadcast %29 : vector<8x1xf32> to vector<8x128xf32>
    %31 = arith.subf %25, %30 : vector<8x128xf32>
    %32 = arith.mulf %31, %31 : vector<8x128xf32>
    %c3 = arith.constant 3 : index
    %c0_14 = arith.constant 0 : index
    %33 = vector.load %arg3[%c3, %c0_14] : memref<4x128xf32, #tpu.memory_space<vmem>>, vector<1x128xf32>
    %34 = vector.broadcast %33 : vector<1x128xf32> to vector<8x128xf32>
    %35 = arith.mulf %32, %34 : vector<8x128xf32>
    %cst_15 = arith.constant dense<0.000000e+00> : vector<8xf32>
    %36 = vector.multi_reduction <add>, %35, %cst_15 [1] : vector<8x128xf32> to vector<8xf32>
    %37 = vector.shape_cast %36 : vector<8xf32> to vector<8x1xf32>
    %cst_16 = arith.constant 1.562500e-02 : f32
    %38 = vector.broadcast %cst_16 : f32 to vector<8x1xf32>
    %39 = arith.mulf %37, %38 : vector<8x1xf32>
    %cst_17 = arith.constant 9.99999974E-6 : f32
    %40 = vector.broadcast %cst_17 : f32 to vector<8x1xf32>
    %41 = arith.addf %39, %40 : vector<8x1xf32>
    %42 = math.rsqrt %41 : vector<8x1xf32>
    %43 = vector.broadcast %42 : vector<8x1xf32> to vector<8x128xf32>
    %44 = arith.mulf %31, %43 : vector<8x128xf32>
    %c1 = arith.constant 1 : index
    %c0_18 = arith.constant 0 : index
    %45 = vector.load %arg3[%c1, %c0_18] : memref<4x128xf32, #tpu.memory_space<vmem>>, vector<1x128xf32>
    %46 = vector.broadcast %45 : vector<1x128xf32> to vector<8x128xf32>
    %47 = arith.mulf %44, %46 : vector<8x128xf32>
    %c2 = arith.constant 2 : index
    %c0_19 = arith.constant 0 : index
    %48 = vector.load %arg3[%c2, %c0_19] : memref<4x128xf32, #tpu.memory_space<vmem>>, vector<1x128xf32>
    %49 = vector.broadcast %48 : vector<1x128xf32> to vector<8x128xf32>
    %50 = arith.addf %47, %49 : vector<8x128xf32>
    %c0_20 = arith.constant 0 : index
    %c0_21 = arith.constant 0 : index
    %51 = vector.load %arg5[%c0_20, %c0_21] : memref<8x128xf32, #tpu.memory_space<vmem>>, vector<8x128xf32>
    tpu.vector_store %arg5[%c0_20, %c0_21], %50 {strides = array<i32>} : memref<8x128xf32, #tpu.memory_space<vmem>>, vector<8x128xf32>,
    return
  }
  func.func @transform_0(%arg0: i32) -> (i32, i32) {
    %c0_i32 = arith.constant 0 : i32
    %c0_i32_0 = arith.constant 0 : i32
    return %arg0, %c0_i32 : i32, i32
  }
  func.func @transform_1(%arg0: i32) -> (i32, i32) {
    %c0_i32 = arith.constant 0 : i32
    %c0_i32_0 = arith.constant 0 : i32
    %c0_i32_1 = arith.constant 0 : i32
    return %c0_i32, %c0_i32_0 : i32, i32
  }
  func.func @transform_2(%arg0: i32) -> (i32, i32) {
    %c0_i32 = arith.constant 0 : i32
    %c0_i32_0 = arith.constant 0 : i32
    %c0_i32_1 = arith.constant 0 : i32
    return %c0_i32, %c0_i32_0 : i32, i32
  }
  func.func @transform_3(%arg0: i32) -> (i32, i32) {
    %c0_i32 = arith.constant 0 : i32
    %c0_i32_0 = arith.constant 0 : i32
    %c0_i32_1 = arith.constant 0 : i32
    return %c0_i32, %c0_i32_0 : i32, i32
  }
  func.func @transform_4(%arg0: i32) -> (i32, i32) {
    %c0_i32 = arith.constant 0 : i32
    %c0_i32_0 = arith.constant 0 : i32
    return %arg0, %c0_i32 : i32, i32
  }
}

</mosaic_0001>

<llo_original>
// kernel: patch_embedding.1
$region0: #{patch_embedding.1}
  #allocation0 [shape = 'u32[]', space=smem, size = 0x4, offset = 0x4, fixed_abs, tag = 'smem constant byte address 0x4 - core index']
  #allocation1 [shape = 'u32[144,128]{1,0:T(1,128)}', space=vmem, size = 0x12000, scoped, tag = 'internal scratch']
  %s0 = inlined_call_operand.vmem [shape: f32[16,128], index: 0, kind: input, shape index: {}]
  %s1 = inlined_call_operand.vmem [shape: bf16[128,128], index: 1, kind: input, shape index: {}]
  %s2 = inlined_call_operand.vmem [shape: f32[4,128], index: 2, kind: input, shape index: {}]
  %s3 = inlined_call_operand.vmem [shape: f32[1,128], index: 3, kind: input, shape index: {}]
  %s4 = inlined_call_operand.vmem [shape: f32[16,128], index: 4, kind: output, shape index: {}]
  %s5 = sld [smem:[#allocation0]]
  $region49: #{patch_embedding.1} parent=0
    _
  %s7 = ssub.s32 1, %s5
  %s8 = scalar_select 0, %s7, %s5
  loop: start=0, step=1, limit=4
  $region2: #{patch_embedding.1} parent=0 // loop_pre_header
    _
  $region3: #{patch_embedding.1} parent=0 // loop_header
    %s10 = sphi 0, %s14
    %p11 = scmp.ge.s32.totalorder %s10, 4
    %s20 = sphi 0, %s22
    %s23 = sphi 0, %s20
    %s24 = sphi 0, %s23
    %s40 = sphi 0, %s24
    %s44 = sphi 0, %s44
    %s46 = sphi 0, %s44
    %s47 = sphi 0, %s46
    %s61 = sphi 0, %s47
    %s65 = sphi 0, %s65
    %s67 = sphi 0, %s65
    %s68 = sphi 0, %s67
    %s82 = sphi 0, %s68
    %s86 = sphi 0, %s86
    %s88 = sphi 0, %s86
    %s89 = sphi 0, %s88
    %s103 = sphi 0, %s89
    %s109 = sphi 0, %s111
    %s112 = sphi 0, %s109
    %s113 = sphi 0, %s112
    %s129 = sphi 0, %s113
  $region4: #{patch_embedding.1} parent=0 // loop_header_branch
    %13 = sbr.rel (%p11) target = $region8
  $region5: #{patch_embedding.1} parent=0 // loop_body
    %s15 = ssub.s32 %s10, 1
    %s16 = ssub.s32 %s10, 2
    %s17 = sadd.s32 %s10, 1
    %s18 = ssub.s32 %s10, %s17
    %p19 = scmp.eq.s32.totalorder %s18, 0
    %s21 = sadd.s32 %s20, 1
    %s22 = scalar_select %p19, %s20, %s21
    %p25 = pneg %p19
    %p26 = scmp.eq.s32.totalorder %s10, 1
    %p27 = por %p25, %p26
    %p28 = scmp.ne.s32.totalorder %s20, %s23
    %p29 = scmp.eq.s32.totalorder %s10, 0
    %p30 = por %p28, %p29
    %p31 = scmp.ne.s32.totalorder %s20, %s23
    %p32 = scmp.eq.s32.totalorder %s15, 1
    %p33 = por %p31, %p32
    %p34 = scmp.ne.s32.totalorder %s23, %s24
    %p35 = scmp.eq.s32.totalorder %s15, 0
    %p36 = por %p34, %p35
    %p37 = scmp.ne.s32.totalorder %s23, %s24
    %p38 = scmp.eq.s32.totalorder %s16, 1
    %p39 = por %p37, %p38
    %p41 = scmp.ne.s32.totalorder %s24, %s40
    %p42 = scmp.eq.s32.totalorder %s16, 0
    %p43 = por %p41, %p42
    %s45 = sadd.s32 %s44, 1
    %p48 = scmp.eq.s32.totalorder %s10, 1
    %p49 = scmp.ne.s32.totalorder %s44, %s46
    %p50 = scmp.eq.s32.totalorder %s10, 0
    %p51 = por %p49, %p50
    %p52 = scmp.ne.s32.totalorder %s44, %s46
    %p53 = scmp.eq.s32.totalorder %s15, 1
    %p54 = por %p52, %p53
    %p55 = scmp.ne.s32.totalorder %s46, %s47
    %p56 = scmp.eq.s32.totalorder %s15, 0
    %p57 = por %p55, %p56
    %p58 = scmp.ne.s32.totalorder %s46, %s47
    %p59 = scmp.eq.s32.totalorder %s16, 1
    %p60 = por %p58, %p59
    %p62 = scmp.ne.s32.totalorder %s47, %s61
    %p63 = scmp.eq.s32.totalorder %s16, 0
    %p64 = por %p62, %p63
    %s66 = sadd.s32 %s65, 1
    %p69 = scmp.eq.s32.totalorder %s10, 1
    %p70 = scmp.ne.s32.totalorder %s65, %s67
    %p71 = scmp.eq.s32.totalorder %s10, 0
    %p72 = por %p70, %p71
    %p73 = scmp.ne.s32.totalorder %s65, %s67
    %p74 = scmp.eq.s32.totalorder %s15, 1
    %p75 = por %p73, %p74
    %p76 = scmp.ne.s32.totalorder %s67, %s68
    %p77 = scmp.eq.s32.totalorder %s15, 0
    %p78 = por %p76, %p77
    %p79 = scmp.ne.s32.totalorder %s67, %s68
    %p80 = scmp.eq.s32.totalorder %s16, 1
    %p81 = por %p79, %p80
    %p83 = scmp.ne.s32.totalorder %s68, %s82
    %p84 = scmp.eq.s32.totalorder %s16, 0
    %p85 = por %p83, %p84
    %s87 = sadd.s32 %s86, 1
    %p90 = scmp.eq.s32.totalorder %s10, 1
    %p91 = scmp.ne.s32.totalorder %s86, %s88
    %p92 = scmp.eq.s32.totalorder %s10, 0
    %p93 = por %p91, %p92
    %p94 = scmp.ne.s32.totalorder %s86, %s88
    %p95 = scmp.eq.s32.totalorder %s15, 1
    %p96 = por %p94, %p95
    %p97 = scmp.ne.s32.totalorder %s88, %s89
    %p98 = scmp.eq.s32.totalorder %s15, 0
    %p99 = por %p97, %p98
    %p100 = scmp.ne.s32.totalorder %s88, %s89
    %p101 = scmp.eq.s32.totalorder %s16, 1
    %p102 = por %p100, %p101
    %p104 = scmp.ne.s32.totalorder %s89, %s103
    %p105 = scmp.eq.s32.totalorder %s16, 0
    %p106 = por %p104, %p105
    %s107 = ssub.s32 %s10, %s17
    %p108 = scmp.eq.s32.totalorder %s107, 0
    %s110 = sadd.s32 %s109, 1
    %s111 = scalar_select %p108, %s109, %s110
    %p114 = pneg %p108
    %p115 = scmp.eq.s32.totalorder %s10, 1
    %p116 = por %p114, %p115
    %p117 = scmp.ne.s32.totalorder %s109, %s112
    %p118 = scmp.eq.s32.totalorder %s10, 0
    %p119 = por %p117, %p118
    %p120 = scmp.ne.s32.totalorder %s109, %s112
    %p121 = scmp.eq.s32.totalorder %s15, 1
    %p122 = por %p120, %p121
    %p123 = scmp.ne.s32.totalorder %s112, %s113
    %p124 = scmp.eq.s32.totalorder %s15, 0
    %p125 = por %p123, %p124
    %p126 = scmp.ne.s32.totalorder %s112, %s113
    %p127 = scmp.eq.s32.totalorder %s16, 1
    %p128 = por %p126, %p127
    %p130 = scmp.ne.s32.totalorder %s113, %s129
    %p131 = scmp.eq.s32.totalorder %s16, 0
    %p132 = por %p130, %p131
    %p133 = scmp.le.s32.totalorder 1, %s10
    %p134 = scmp.lt.s32.totalorder %s10, 3
    %p135 = pnand %p133, %p134
    %p136 = pneg %p135
    // Predicated region
    $region9: #{patch_embedding.1} parent=5 // pred_check
      _
    $region10: #{patch_embedding.1} parent=5 // pred_check_branch
      %138 = sbr.rel (%p135) target = $region12
    $region11: #{patch_embedding.1} parent=5 // pred_region
      %s139 = ssub.s32 %s10, 1
      // Predicated region
      $region13: #{patch_embedding.1} parent=11 // pred_check
        %p140 = pneg %p57
      $region14: #{patch_embedding.1} parent=11 // pred_check_branch
        %142 = sbr.rel (%p140) target = $region16
      $region15: #{patch_embedding.1} parent=11 // pred_region
        _
      $region16: #{patch_embedding.1} parent=11 // pred_fallthru
        _
      // Predicated region
      $region17: #{patch_embedding.1} parent=11 // pred_check
        %p143 = pneg %p78
      $region18: #{patch_embedding.1} parent=11 // pred_check_branch
        %145 = sbr.rel (%p143) target = $region20
      $region19: #{patch_embedding.1} parent=11 // pred_region
        _
      $region20: #{patch_embedding.1} parent=11 // pred_fallthru
        _
      // Predicated region
      $region21: #{patch_embedding.1} parent=11 // pred_check
        %p146 = pneg %p99
      $region22: #{patch_embedding.1} parent=11 // pred_check_branch
        %148 = sbr.rel (%p146) target = $region24
      $region23: #{patch_embedding.1} parent=11 // pred_region
        _
      $region24: #{patch_embedding.1} parent=11 // pred_fallthru
        _
    $region12: #{patch_embedding.1} parent=5 // pred_fallthru
      _
    %p149 = scmp.lt.s32.totalorder %s10, 2
    // Predicated region
    $region25: #{patch_embedding.1} parent=5 // pred_check
      %p150 = pneg %p149
    $region26: #{patch_embedding.1} parent=5 // pred_check_branch
      %152 = sbr.rel (%p150) target = $region28
    $region27: #{patch_embedding.1} parent=5 // pred_region
      // Predicated region
      $region29: #{patch_embedding.1} parent=27 // pred_check
        %p153 = pneg %p30
      $region30: #{patch_embedding.1} parent=27 // pred_check_branch
        %155 = sbr.rel (%p153) target = $region32
      $region31: #{patch_embedding.1} parent=27 // pred_region
        %p156 = scmp.lt.s32.totalorder %s10, 1
        %s157 = scalar_select %p156, %s10, 1
        %s158 = smul.addr %s157, 8
        %s159 = scalar_lea.vmem %s0, %s158
      $region32: #{patch_embedding.1} parent=27 // pred_fallthru
        _
    $region28: #{patch_embedding.1} parent=5 // pred_fallthru
      _
    %p160 = scmp.le.s32.totalorder 1, %s10
    %p161 = scmp.lt.s32.totalorder %s10, 3
    %p162 = pnand %p160, %p161
    %p163 = pneg %p162
    // Predicated region
    $region33: #{patch_embedding.1} parent=5 // pred_check
      _
    $region34: #{patch_embedding.1} parent=5 // pred_check_branch
      %165 = sbr.rel (%p162) target = $region36
    $region35: #{patch_embedding.1} parent=5 // pred_region
      %s166 = ssub.s32 %s10, 1
      %p167 = scmp.lt.s32.totalorder %s15, 1
      %s168 = scalar_select %p167, %s15, 1
      %s169 = smul.addr %s168, 8
      %s170 = scalar_lea.vmem %s0, %s169
      %p171 = pneg %p36
      %p172 = pneg %p33
      %p173 = pneg %p57
      %p174 = pneg %p54
      %p175 = pneg %p78
      %p176 = pneg %p75
      %p177 = pneg %p99
      %p178 = pneg %p96
      %p179 = pneg %p125
      %p180 = pneg %p122
      %p181 = scmp.lt.s32.totalorder %s15, 1
      %s182 = scalar_select %p181, %s15, 1
      %s183 = smul.addr %s182, 8
      %s184 = scalar_lea.vmem %s4, %s183
      %p185 = scmp.lt.s32.totalorder %s15, 1
      %s186 = scalar_select %p185, %s15, 1
      %s187 = smul.addr %s186, 8
      %s188 = scalar_lea.vmem %s0, %s187
      %p189 = scmp.lt.s32.totalorder %s15, 1
      %s190 = scalar_select %p189, %s15, 1
      %s191 = smul.addr %s190, 8
      %s192 = scalar_lea.vmem %s4, %s191
      %v194 = vld [vmem:[%s188] sm:$0xff]
      %195 = vadd.xlane.f32.xlu0 %v194
      %v196 = vpop.xlane.xlu0 %195
      %v197 = vmul.f32 %v196, 0.03125
      %v198 = vsub.f32 %v194, %v197
      %v199 = vld [vmem:[%s3] sm:$0x1]
      %v201 = vlaneseq
      %v202 = vshrl.u32 %v201, 7
      %v203 = vsub.s32 0, %v202
      %v204 = vrot.slane %v199, %v203
      %v206 = vmul.f32 %v198, %v204
      %v207 = vmul.f32 %v206, %v206
      %208 = vadd.xlane.f32.xlu0 %v207
      %v209 = vpop.xlane.xlu0 %208
      %v210 = vmul.f32 %v209, 0.03125
      %v211 = vadd.f32 %v210, 1e-05
      %v212 = vrsqrt.pop %v211
      %v213 = vmul.f32 %v206, %v212
      %v214 = vpack.c.bf16 %v213, %v213
      %v215 = vld [vmem:[%s1] sm:$0xf]
      %v216 = vld [vmem:[%s1 + $0x4] sm:$0xf]
      %v217 = vld [vmem:[%s1 + $0x8] sm:$0xf]
      %v218 = vld [vmem:[%s1 + $0xc] sm:$0xf]
      %v219 = vld [vmem:[%s1 + $0x10] sm:$0xf]
      %v220 = vld [vmem:[%s1 + $0x14] sm:$0xf]
      %v221 = vld [vmem:[%s1 + $0x18] sm:$0xf]
      %v222 = vld [vmem:[%s1 + $0x1c] sm:$0xf]
      %v223 = vld [vmem:[%s1 + $0x20] sm:$0xf]
      %v224 = vld [vmem:[%s1 + $0x24] sm:$0xf]
      %v225 = vld [vmem:[%s1 + $0x28] sm:$0xf]
      %v226 = vld [vmem:[%s1 + $0x2c] sm:$0xf]
      %v227 = vld [vmem:[%s1 + $0x30] sm:$0xf]
      %v228 = vld [vmem:[%s1 + $0x34] sm:$0xf]
      %v229 = vld [vmem:[%s1 + $0x38] sm:$0xf]
      %v230 = vld [vmem:[%s1 + $0x3c] sm:$0xf]
      %v231 = vld [vmem:[%s2] sm:$0x1]
      %v232 = vlaneseq
      %v233 = vshrl.u32 %v232, 7
      %v234 = vsub.s32 0, %v233
      %v235 = vrot.slane %v231, %v234
      %v252 = vunpack.c.l.b16 %v215
      %v253 = vunpack.c.l.b16 %v216
      %v254 = vunpack.c.l.b16 %v217
      %v255 = vunpack.c.l.b16 %v218
      %v256 = vunpack.c.l.b16 %v219
      %v257 = vunpack.c.l.b16 %v220
      %v258 = vunpack.c.l.b16 %v221
      %v259 = vunpack.c.l.b16 %v222
      %v260 = vunpack.c.l.b16 %v223
      %v261 = vunpack.c.l.b16 %v224
      %v262 = vunpack.c.l.b16 %v225
      %v263 = vunpack.c.l.b16 %v226
      %v264 = vunpack.c.l.b16 %v227
      %v265 = vunpack.c.l.b16 %v228
      %v266 = vunpack.c.l.b16 %v229
      %v267 = vunpack.c.l.b16 %v230
      %v268 = vpack.c.b16 %v253, %v252
      %v269 = vpack.c.b16 %v255, %v254
      %v270 = vpack.c.b16 %v257, %v256
      %v271 = vpack.c.b16 %v259, %v258
      %v272 = vpack.c.b16 %v261, %v260
      %v273 = vpack.c.b16 %v263, %v262
      %v274 = vpack.c.b16 %v265, %v264
      %v275 = vpack.c.b16 %v267, %v266
      %284 = vmatprep.subr.bf16.mxu0 0
      %285 = vmatpush1.bf16.msra.mxu0 %v268
      %286 = vmatprep.subr.bf16.mxu0 0
      %287 = vmatpush1.bf16.msra.mxu0 %v269
      %288 = vmatprep.subr.bf16.mxu0 0
      %289 = vmatpush1.bf16.msra.mxu0 %v270
      %290 = vmatprep.subr.bf16.mxu0 0
      %291 = vmatpush1.bf16.msra.mxu0 %v271
      %292 = vmatprep.subr.bf16.mxu0 0
      %293 = vmatpush1.bf16.msra.mxu0 %v272
      %294 = vmatprep.subr.bf16.mxu0 0
      %295 = vmatpush1.bf16.msra.mxu0 %v273
      %296 = vmatprep.subr.bf16.mxu0 0
      %297 = vmatpush1.bf16.msra.mxu0 %v274
      %298 = vmatprep.subr.bf16.mxu0 0
      %299 = vmatpush1.bf16.msra.mxu0 %v275
      %300 = vmatprep.subr.bf16.mxu0 0
      %301 = vmatpush1.bf16.msra.mxu0 0
      %302 = vmatprep.subr.bf16.mxu0 0
      %303 = vmatpush1.bf16.msra.mxu0 0
      %304 = vmatprep.subr.bf16.mxu0 0
      %305 = vmatpush1.bf16.msra.mxu0 0
      %306 = vmatprep.subr.bf16.mxu0 0
      %307 = vmatpush1.bf16.msra.mxu0 0
      %308 = vmatprep.subr.bf16.mxu0 0
      %309 = vmatpush1.bf16.msra.mxu0 0
      %310 = vmatprep.subr.bf16.mxu0 0
      %311 = vmatpush1.bf16.msra.mxu0 0
      %312 = vmatprep.subr.bf16.mxu0 0
      %313 = vmatpush1.bf16.msra.mxu0 0
      %314 = vmatprep.subr.bf16.mxu0 0
      %315 = vmatpush1.bf16.msra.mxu0 0
      %316 = vmatprep.mubr.bf16.mxu0 0
      %317 = vmatmul.mubr.bf16.gmra.mrb[0].mxu0 %v214
      %v318 = vpop.f32.mrb[0].mxu0
      %v319 = vadd.f32 %v235, %v318
      %v320 = vpop.f32.mrb[0].mxu0
      %v321 = vpop.f32.mrb[0].mxu0
      %v322 = vpop.f32.mrb[0].mxu0
      %323 = vdwg.mxu0
      %324 = vadd.xlane.f32.xlu0 %v319
      %v325 = vpop.xlane.xlu0 %324
      %v326 = vmul.f32 %v325, 0.015625
      %v327 = vsub.f32 %v319, %v326
      %v328 = vmul.f32 %v327, %v327
      %v329 = vld [vmem:[%s2 + $0x3] sm:$0x1]
      %v330 = vlaneseq
      %v331 = vshrl.u32 %v330, 7
      %v332 = vsub.s32 0, %v331
      %v333 = vrot.slane %v329, %v332
      %v334 = vmul.f32 %v328, %v333
      %335 = vadd.xlane.f32.xlu0 %v334
      %v336 = vpop.xlane.xlu0 %335
      %v337 = vmul.f32 %v336, 0.015625
      %v338 = vadd.f32 %v337, 1e-05
      %v339 = vrsqrt.pop %v338
      %v340 = vmul.f32 %v327, %v339
      %v341 = vld [vmem:[%s2 + $0x1] sm:$0x1]
      %v342 = vlaneseq
      %v343 = vshrl.u32 %v342, 7
      %v344 = vsub.s32 0, %v343
      %v345 = vrot.slane %v341, %v344
      %v346 = vmul.f32 %v340, %v345
      %v347 = vld [vmem:[%s2 + $0x2] sm:$0x1]
      %v348 = vlaneseq
      %v349 = vshrl.u32 %v348, 7
      %v350 = vsub.s32 0, %v349
      %v351 = vrot.slane %v347, %v350
      %v352 = vadd.f32 %v346, %v351
      %353 = vst [vmem:[%s192] sm:$0xff] %v352
      %p354 = scmp.lt.s32.totalorder %s15, 1
      %s355 = scalar_select %p354, %s15, 1
      %s356 = smul.addr %s355, 8
      %s357 = scalar_lea.vmem %s4, %s356
      // Predicated region
      $region37: #{patch_embedding.1} parent=35 // pred_check
        %p358 = pneg %p122
      $region38: #{patch_embedding.1} parent=35 // pred_check_branch
        %360 = sbr.rel (%p358) target = $region40
      $region39: #{patch_embedding.1} parent=35 // pred_region
        _
      $region40: #{patch_embedding.1} parent=35 // pred_fallthru
        _
    $region36: #{patch_embedding.1} parent=5 // pred_fallthru
      _
    %p361 = scmp.le.s32.totalorder 2, %s10
    // Predicated region
    $region41: #{patch_embedding.1} parent=5 // pred_check
      %p362 = pneg %p361
    $region42: #{patch_embedding.1} parent=5 // pred_check_branch
      %364 = sbr.rel (%p362) target = $region44
    $region43: #{patch_embedding.1} parent=5 // pred_region
      %s365 = ssub.s32 %s10, 2
      // Predicated region
      $region45: #{patch_embedding.1} parent=43 // pred_check
        %p366 = pneg %p128
      $region46: #{patch_embedding.1} parent=43 // pred_check_branch
        %368 = sbr.rel (%p366) target = $region48
      $region47: #{patch_embedding.1} parent=43 // pred_region
        %p369 = scmp.lt.s32.totalorder %s16, 1
        %s370 = scalar_select %p369, %s16, 1
        %s371 = smul.addr %s370, 8
        %s372 = scalar_lea.vmem %s4, %s371
      $region48: #{patch_embedding.1} parent=43 // pred_fallthru
        _
    $region44: #{patch_embedding.1} parent=5 // pred_fallthru
      _
  $region6: #{patch_embedding.1} parent=0 // loop_footer
    %s14 = sadd.s32 1, %s10
  $region7: #{patch_embedding.1} parent=0 // loop_footer_branch
    %9 = sbr.rel target = $region3
  $region8: #{patch_embedding.1} parent=0 // loop_exit
    _

</llo_original>
